<compile_context>
chip_gen: v5e
topology: v5e:2x2
jax: 0.10.0
libtpu: 0.0.40
codegen_flags: <defaults>
</compile_context>

<pallas_src>
import functools

import jax
import jax.numpy as jnp
from jax.experimental import pallas as pl
from jax.experimental.pallas import tpu as pltpu

_MAX_LANE_TILE = 8192          # caps the static unroll of the per-tile accumulate loop


def _round_up(x, m):
    return ((x + m - 1) // m) * m


def _round_down(x, m):
    return (x // m) * m


def _cdiv(a, b):
    return -(-a // b)


def _vmem_budgets():
    """Generation-aware (vmem_limit, per-buffer tile bytes, fused slab bytes)."""
    try:
        cap = int(getattr(pltpu.get_tpu_info(), "vmem_capacity_bytes",
                          64 * 1024 * 1024))
    except Exception:
        cap = 64 * 1024 * 1024                            # conservative fallback
    vmem_limit = min(96 * 1024 * 1024, (cap * 3) // 4)    # 96 MiB (v5e/v6e), 48 MiB (v7x)
    tile_bytes = min(6 * 1024 * 1024, vmem_limit // 12)   # per-buffer streaming tile
    fused_slab = vmem_limit // 5                          # in+out double-buffered ~ 4 slabs
    return vmem_limit, tile_bytes, fused_slab


# --------------------------- fused single-pass path ---------------------------
def _fused_kernel(feat_ref, gamma_ref, beta_ref, out_ref, *, n, eps):
    """feat/out: (B, Cc, HW); gamma/beta: (B, Cc, 1). Stats per channel over (B, HW)."""
    x = feat_ref[...]
    mean = jnp.sum(jnp.sum(x, axis=2, keepdims=True), axis=0, keepdims=True) * (1.0 / n)
    centered = x - mean
    var = jnp.sum(jnp.sum(centered * centered, axis=2, keepdims=True),
                  axis=0, keepdims=True) * (1.0 / (n - 1))      # unbiased (torch.var)
    scale = gamma_ref[...] * jax.lax.rsqrt(var + eps)
    out_ref[...] = centered * scale + beta_ref[...]


def _choose_fused_chunk(B, C, HW, slab_budget):
    """Channels per fused block so a (B, c_chunk, HW) f32 slab fits the budget."""
    bpc = B * HW * 4
    if C * bpc <= slab_budget:
        if C >= 16:     # split so megacore gets >=2 parallel blocks and DMA pipelines
            return min(C, _round_up(_cdiv(C, 2), 8))
        return C
    if C >= 8 and 8 * bpc <= slab_budget:
        return max(8, _round_down(slab_budget // bpc, 8))
    return None


# ------------------------ two-pass fallback: pass 1 ---------------------------
def _stats_kernel(feat_ref, sum_ref, sq_ref, sum_acc, sq_acc, *,
                  hw, lane_tile, group_w, needs_mask):
    j = pl.program_id(1)

    @pl.when(j == 0)
    def _():
        sum_acc[...] = jnp.zeros_like(sum_acc)
        sq_acc[...] = jnp.zeros_like(sq_acc)

    x = feat_ref[...]                                    # (r_tile, lane_tile)
    if needs_mask:                                       # ragged lane tail (no jnp.pad)
        lane = jax.lax.broadcasted_iota(jnp.int32, x.shape, 1) + j * lane_tile
        x = jnp.where(lane < hw, x, 0.0)

    # Accumulate 128-lane slabs with plain VPU adds (no XLU reduce per tile).
    for g in range(lane_tile // group_w):
        xs = x[:, g * group_w:(g + 1) * group_w]
        sum_acc[...] += xs
        sq_acc[...] += xs * xs

    @pl.when(j == pl.num_programs(1) - 1)                # single XLU reduce per row chunk
    def _():
        sum_ref[...] = jnp.sum(sum_acc[...], axis=1, keepdims=True)
        sq_ref[...] = jnp.sum(sq_acc[...], axis=1, keepdims=True)


# ------------------------ two-pass fallback: pass 2 ---------------------------
def _apply_kernel(feat_ref, scale_ref, shift_ref, out_ref):
    out_ref[...] = feat_ref[...] * scale_ref[...] + shift_ref[...]


# ----------------------------------- forward ----------------------------------
def cbn_forward(feature_nchw, cond_emb, params, eps=1e-5,
                use_betas=True, use_gammas=True,
                force_two_pass=False, tile_bytes_override=None):
    """feature_nchw: (B, C, H, W) f32; cond_emb: (B, cond_size) f32.
    Returns (out, cond_emb) like the PyTorch module."""
    B, C, H, W = feature_nchw.shape
    HW = H * W
    n = B * HW
    if n <= 1:
        raise ValueError("CBN requires B*H*W > 1 (unbiased variance divides by n-1).")

    vmem_limit, tile_bytes, fused_slab = _vmem_budgets()
    if tile_bytes_override is not None:
        tile_bytes = tile_bytes_override

    feat3 = feature_nchw.reshape(B, C, HW).astype(jnp.float32)   # pure reshape

    # Tiny conditional MLPs (B x cond -> B x C): MXU-padded micro-matmuls, hoisted to XLA.
    if use_gammas:
        hg = jnp.maximum(cond_emb @ params["w1g"] + params["b1g"], 0.0)
        delta_gamma = hg @ params["w2g"] + params["b2g"]
    else:
        delta_gamma = jnp.zeros((B, C), jnp.float32)
    if use_betas:
        hb = jnp.maximum(cond_emb @ params["w1b"] + params["b1b"], 0.0)
        delta_beta = hb @ params["w2b"] + params["b2b"]
    else:
        delta_beta = jnp.zeros((B, C), jnp.float32)
    gamma = (params["gammas"] + delta_gamma).astype(jnp.float32)     # (B, C)
    beta = (params["betas"] + delta_beta).astype(jnp.float32)        # (B, C)

    # ---------------- fused single-pass path (1 read + 1 write of HBM) ----------------
    c_chunk = None if force_two_pass else _choose_fused_chunk(B, C, HW, fused_slab)
    if c_chunk is not None:
        n_chunks = _cdiv(C, c_chunk)   # ragged channel edge block is safe: per-channel
        out3 = pl.pallas_call(         # stats + masked edge-block store
            functools.partial(_fused_kernel, n=n, eps=eps),
            out_shape=jax.ShapeDtypeStruct((B, C, HW), jnp.float32),
            grid_spec=pltpu.PrefetchScalarGridSpec(
                num_scalar_prefetch=0,
                grid=(n_chunks,),
                in_specs=[pl.BlockSpec((B, c_chunk, HW), lambda i: (0, i, 0)),
                          pl.BlockSpec((B, c_chunk, 1), lambda i: (0, i, 0)),
                          pl.BlockSpec((B, c_chunk, 1), lambda i: (0, i, 0))],
                out_specs=pl.BlockSpec((B, c_chunk, HW), lambda i: (0, i, 0)),
            ),
            compiler_params=pltpu.CompilerParams(
                dimension_semantics=("parallel",),
                vmem_limit_bytes=vmem_limit),
        )(feat3, gamma[:, :, None], beta[:, :, None])
        return out3.reshape(B, C, H, W), cond_emb

    # ---------------- two-pass streaming fallback ----------------
    R = B * C
    feat2 = feat3.reshape(R, HW)      # pure reshape: rows = (b, c), lanes = spatial

    # Lane tile: multiple of 128, capped so the accumulate unroll stays small.
    if HW <= 128:
        l_pref = HW
    else:
        l_pref = min(_round_up(HW, 128), _MAX_LANE_TILE)

    # Row tile: multiple of 8; >=2 row chunks when possible so both TCs get work.
    if R >= 16:
        r_half = _round_up(_cdiv(R, 2), 8)
        r_by_budget = _round_down(tile_bytes // (l_pref * 4), 8)
        r_tile = min(max(8, min(r_half, r_by_budget)), R)
    else:
        r_tile = R
    n_row = _cdiv(R, r_tile)

    if HW <= 128:
        l_tile = HW
    else:
        l_tile = min(l_pref, _round_down(max(128, tile_bytes // (r_tile * 4)), 128))
    n_lane = _cdiv(HW, l_tile)
    group_w = min(128, l_tile)
    needs_mask = (HW % l_tile) != 0

    feat_spec = pl.BlockSpec((r_tile, l_tile), lambda i, j: (i, j))
    vec_spec = pl.BlockSpec((r_tile, 1), lambda i, j: (i, 0))

    # Pass 1: streamed per-row sum / sum-of-squares.
    sum_r, sq_r = pl.pallas_call(
        functools.partial(_stats_kernel, hw=HW, lane_tile=l_tile,
                          group_w=group_w, needs_mask=needs_mask),
        out_shape=(jax.ShapeDtypeStruct((R, 1), jnp.float32),
                   jax.ShapeDtypeStruct((R, 1), jnp.float32)),
        grid_spec=pltpu.PrefetchScalarGridSpec(
            num_scalar_prefetch=0,
            grid=(n_row, n_lane),
            in_specs=[feat_spec],
            out_specs=(vec_spec, vec_spec),
            scratch_shapes=[pltpu.VMEM((r_tile, group_w), jnp.float32),
                            pltpu.VMEM((r_tile, group_w), jnp.float32)],
        ),
        compiler_params=pltpu.CompilerParams(
            dimension_semantics=("parallel", "arbitrary"),
            vmem_limit_bytes=vmem_limit),
    )(feat2)

    # Tiny XLA merge: per-channel mean / unbiased variance, folded into scale/shift.
    sum_c = jnp.sum(sum_r.reshape(B, C), axis=0)
    sq_c = jnp.sum(sq_r.reshape(B, C), axis=0)
    mean_c = sum_c / n
    # TODO(synk): the single-pass variance formula can cancel in f32 for inputs with a
    # large DC offset; switch to per-tile Welford merging if inputs are not ~centered.
    var_c = (sq_c - sum_c * mean_c) / (n - 1)
    inv_std_c = jax.lax.rsqrt(var_c + eps)
    scale2 = gamma * inv_std_c[None, :]                  # (B, C)
    shift2 = beta - mean_c[None, :] * scale2             # (B, C)
    scale = scale2.reshape(R, 1)
    shift = shift2.reshape(R, 1)

    # Pass 2: streamed normalize + affine at exact output shape (edge stores masked).
    # TODO(synk): input_output_aliases={0: 0} would drop one HBM allocation, but risks a
    # defensive copy since `feature` is not donated; left unaliased.
    out2 = pl.pallas_call(
        _apply_kernel,
        out_shape=jax.ShapeDtypeStruct((R, HW), jnp.float32),
        grid_spec=pltpu.PrefetchScalarGridSpec(
            num_scalar_prefetch=0,
            grid=(n_row, n_lane),
            in_specs=[feat_spec, vec_spec, vec_spec],
            out_specs=feat_spec,
        ),
        compiler_params=pltpu.CompilerParams(
            dimension_semantics=("parallel", "parallel"),
            vmem_limit_bytes=vmem_limit),
    )(feat2, scale, shift)

    return out2.reshape(B, C, H, W), cond_emb


# ----------------------------- init & reference --------------------------------
def init_cbn_params(key, cond_size, in_channel, out_channel):
    """Matches the PyTorch __init__: Linear weights xavier_uniform, biases 0.1,
       gammas=1, betas=0. Weights stored as (fan_in, fan_out) so forward is x @ W."""
    def xavier(k, fan_in, fan_out):
        bound = (6.0 / (fan_in + fan_out)) ** 0.5
        return jax.random.uniform(k, (fan_in, fan_out), jnp.float32, -bound, bound)

    k1, k2, k3, k4 = jax.random.split(key, 4)
    return {
        "w1g": xavier(k1, cond_size, in_channel),
        "b1g": jnp.full((1, in_channel), 0.1, jnp.float32),
        "w2g": xavier(k2, in_channel, out_channel),
        "b2g": jnp.full((1, out_channel), 0.1, jnp.float32),
        "w1b": xavier(k3, cond_size, in_channel),
        "b1b": jnp.full((1, in_channel), 0.1, jnp.float32),
        "w2b": xavier(k4, in_channel, out_channel),
        "b2b": jnp.full((1, out_channel), 0.1, jnp.float32),
        "gammas": jnp.ones((1, out_channel), jnp.float32),
        "betas": jnp.zeros((1, out_channel), jnp.float32),
    }


def cbn_reference(feature, cond_emb, params, eps=1e-5):
    """Plain-JAX reference mirroring the PyTorch forward, for validation."""
    B, C, H, W = feature.shape
    hg = jnp.maximum(cond_emb @ params["w1g"] + params["b1g"], 0.0)
    dg = hg @ params["w2g"] + params["b2g"]
    hb = jnp.maximum(cond_emb @ params["w1b"] + params["b1b"], 0.0)
    db = hb @ params["w2b"] + params["b2b"]
    gamma = params["gammas"] + dg
    beta = params["betas"] + db
    flat = feature.transpose(1, 0, 2, 3).reshape(C, -1)
    mean = jnp.mean(flat, axis=1)
    var = jnp.var(flat, axis=1, ddof=1)     # unbiased, like torch.var default
    mean = mean[None, :, None, None]
    var = var[None, :, None, None]
    normalized = (feature - mean) / jnp.sqrt(var + eps)
    return normalized * gamma[:, :, None, None] + beta[:, :, None, None]


if __name__ == "__main__":
    cond_size, in_channel = 32, 16

    def run_case(name, B, C, H, W, k, **kwargs):
        k_feat, k_cond, k_par = jax.random.split(k, 3)
        feature = jax.random.normal(k_feat, (B, C, H, W), jnp.float32)
        cond_emb = jax.random.normal(k_cond, (B, cond_size), jnp.float32)
        params = init_cbn_params(k_par, cond_size, in_channel, C)
        out, cond_out = cbn_forward(feature, cond_emb, params, **kwargs)
        out = jax.block_until_ready(out)
        ref = cbn_reference(feature, cond_emb, params)
        assert out.shape == feature.shape, f"{name}: bad output shape"
        assert cond_out.shape == cond_emb.shape, f"{name}: cond_emb shape changed"
        assert jnp.allclose(out, ref, atol=1e-4, rtol=1e-4), f"{name}: mismatch vs reference"

    key = jax.random.PRNGKey(0)
    k1, k2, k3 = jax.random.split(key, 3)
    # Fused single-pass path (spec-like small shape: B=2, C=4, 16x16).
    run_case("fused", 2, 4, 16, 16, k1)
    # Fused path with multiple (ragged) channel chunks.
    run_case("fused_chunked", 2, 24, 16, 16, k2)
    # Two-pass streaming fallback: multiple row/lane tiles + ragged lane tail masking.
    run_case("two_pass", 2, 16, 40, 40, k3,
             force_two_pass=True, tile_bytes_override=32 * 1024)

    print("KERNEL_OK")
</pallas_src>

<mosaic_0001>
module attributes {stable_mosaic.version = 11 : i64} {
  func.func @_fused_kernel(%arg0: i32, %arg1: memref<2x4x256xf32, #tpu.memory_space<vmem>>, %arg2: memref<2x4x1xf32, #tpu.memory_space<vmem>>, %arg3: memref<2x4x1xf32, #tpu.memory_space<vmem>>, %arg4: memref<2x4x256xf32, #tpu.memory_space<vmem>>) attributes {dimension_semantics = [#tpu.dimension_semantics<parallel>], iteration_bounds = array<i64: 1>, scalar_prefetch = 0 : i64, scratch_operands = 0 : i64, tpu.core_type = #tpu.core_type<tc>, window_params = [{transform_indices = @transform_0, window_bounds = array<i64: 2, 4, 256>}, {transform_indices = @transform_1, window_bounds = array<i64: 2, 4, 1>}, {transform_indices = @transform_2, window_bounds = array<i64: 2, 4, 1>}, {transform_indices = @transform_3, window_bounds = array<i64: 2, 4, 256>}]} {
    %c0 = arith.constant 0 : index
    %c0_0 = arith.constant 0 : index
    %c0_1 = arith.constant 0 : index
    %0 = vector.load %arg1[%c0, %c0_0, %c0_1] : memref<2x4x256xf32, #tpu.memory_space<vmem>>, vector<2x4x256xf32>
    %cst = arith.constant dense<0.000000e+00> : vector<2x4xf32>
    %1 = vector.multi_reduction <add>, %0, %cst [2] : vector<2x4x256xf32> to vector<2x4xf32>
    %2 = vector.shape_cast %1 : vector<2x4xf32> to vector<2x4x1xf32>
    %cst_2 = arith.constant dense<0.000000e+00> : vector<4x1xf32>
    %3 = vector.multi_reduction <add>, %2, %cst_2 [0] : vector<2x4x1xf32> to vector<4x1xf32>
    %4 = vector.shape_cast %3 : vector<4x1xf32> to vector<1x4x1xf32>
    %cst_3 = arith.constant 0.001953125 : f32
    %5 = vector.broadcast %cst_3 : f32 to vector<1x4x1xf32>
    %6 = arith.mulf %4, %5 : vector<1x4x1xf32>
    %7 = vector.broadcast %6 : vector<1x4x1xf32> to vector<2x4x256xf32>
    %8 = arith.subf %0, %7 : vector<2x4x256xf32>
    %9 = arith.mulf %8, %8 : vector<2x4x256xf32>
    %cst_4 = arith.constant dense<0.000000e+00> : vector<2x4xf32>
    %10 = vector.multi_reduction <add>, %9, %cst_4 [2] : vector<2x4x256xf32> to vector<2x4xf32>
    %11 = vector.shape_cast %10 : vector<2x4xf32> to vector<2x4x1xf32>
    %cst_5 = arith.constant dense<0.000000e+00> : vector<4x1xf32>
    %12 = vector.multi_reduction <add>, %11, %cst_5 [0] : vector<2x4x1xf32> to vector<4x1xf32>
    %13 = vector.shape_cast %12 : vector<4x1xf32> to vector<1x4x1xf32>
    %cst_6 = arith.constant 0.00195694715 : f32
    %14 = vector.broadcast %cst_6 : f32 to vector<1x4x1xf32>
    %15 = arith.mulf %13, %14 : vector<1x4x1xf32>
    %c0_7 = arith.constant 0 : index
    %c0_8 = arith.constant 0 : index
    %c0_9 = arith.constant 0 : index
    %16 = vector.load %arg2[%c0_7, %c0_8, %c0_9] : memref<2x4x1xf32, #tpu.memory_space<vmem>>, vector<2x4x1xf32>
    %cst_10 = arith.constant 9.99999974E-6 : f32
    %17 = vector.broadcast %cst_10 : f32 to vector<1x4x1xf32>
    %18 = arith.addf %15, %17 : vector<1x4x1xf32>
    %19 = math.rsqrt %18 : vector<1x4x1xf32>
    %20 = vector.broadcast %19 : vector<1x4x1xf32> to vector<2x4x1xf32>
    %21 = arith.mulf %16, %20 : vector<2x4x1xf32>
    %22 = vector.broadcast %21 : vector<2x4x1xf32> to vector<2x4x256xf32>
    %23 = arith.mulf %8, %22 : vector<2x4x256xf32>
    %c0_11 = arith.constant 0 : index
    %c0_12 = arith.constant 0 : index
    %c0_13 = arith.constant 0 : index
    %24 = vector.load %arg3[%c0_11, %c0_12, %c0_13] : memref<2x4x1xf32, #tpu.memory_space<vmem>>, vector<2x4x1xf32>
    %25 = vector.broadcast %24 : vector<2x4x1xf32> to vector<2x4x256xf32>
    %26 = arith.addf %23, %25 : vector<2x4x256xf32>
    %c0_14 = arith.constant 0 : index
    %c0_15 = arith.constant 0 : index
    %c0_16 = arith.constant 0 : index
    %27 = vector.load %arg4[%c0_14, %c0_15, %c0_16] : memref<2x4x256xf32, #tpu.memory_space<vmem>>, vector<2x4x256xf32>
    tpu.vector_store %arg4[%c0_14, %c0_15, %c0_16], %26 {strides = array<i32>} : memref<2x4x256xf32, #tpu.memory_space<vmem>>, vector<2x4x256xf32>,
    return
  }
  func.func @transform_0(%arg0: i32) -> (i32, i32, i32) {
    %c0_i32 = arith.constant 0 : i32
    %c0_i32_0 = arith.constant 0 : i32
    %c0_i32_1 = arith.constant 0 : i32
    return %c0_i32, %arg0, %c0_i32_0 : i32, i32, i32
  }
  func.func @transform_1(%arg0: i32) -> (i32, i32, i32) {
    %c0_i32 = arith.constant 0 : i32
    %c0_i32_0 = arith.constant 0 : i32
    %c0_i32_1 = arith.constant 0 : i32
    return %c0_i32, %arg0, %c0_i32_0 : i32, i32, i32
  }
  func.func @transform_2(%arg0: i32) -> (i32, i32, i32) {
    %c0_i32 = arith.constant 0 : i32
    %c0_i32_0 = arith.constant 0 : i32
    %c0_i32_1 = arith.constant 0 : i32
    return %c0_i32, %arg0, %c0_i32_0 : i32, i32, i32
  }
  func.func @transform_3(%arg0: i32) -> (i32, i32, i32) {
    %c0_i32 = arith.constant 0 : i32
    %c0_i32_0 = arith.constant 0 : i32
    %c0_i32_1 = arith.constant 0 : i32
    return %c0_i32, %arg0, %c0_i32_0 : i32, i32, i32
  }
}

</mosaic_0001>

<llo_original>
// kernel: tpu_custom_call.1
$region0: #{tpu_custom_call.1}
  #allocation0 [shape = 'u32[]', space=smem, size = 0x4, offset = 0x4, fixed_abs, tag = 'smem constant byte address 0x4 - core index']
  #allocation1 [shape = 'u32[72,128]{1,0:T(1,128)}', space=vmem, size = 0x9000, scoped, tag = 'internal scratch']
  %s0 = inlined_call_operand.vmem [shape: f32[2,4,256], index: 0, kind: input, shape index: {}]
  %s1 = inlined_call_operand.vmem [shape: f32[2,4,1], index: 1, kind: input, shape index: {}]
  %s2 = inlined_call_operand.vmem [shape: f32[2,4,1], index: 2, kind: input, shape index: {}]
  %s3 = inlined_call_operand.hbm [shape: f32[2,4,256], index: 3, kind: output, shape index: {}]
  %s4 = sld [smem:[#allocation0]]
  $region22: #{tpu_custom_call.1} parent=0
    _
  %s6 = ssub.s32 1, %s4
  %s7 = scalar_select 0, %s6, %s4
  $region1: #{tpu_custom_call.1} parent=0
    #allocation2 [shape = 'u8[8192]{0}', space=vmem, size = 0x2000, scoped, tag = 'output window, operand 0, single buffered']
    #allocation3 [shape = 's32[1]{0}', space=sflag, size = 0x4, scoped, tag = 'scoped memory for tpu_custom_call.1']
    %8 = vsyncpa [#allocation3], 0
    // Predicated region
    $region2: #{tpu_custom_call.1} parent=1 // pred_check
      _
    $region3: #{tpu_custom_call.1} parent=1 // pred_check_branch
      %10 = sbr.rel (0) target = $region5
    $region4: #{tpu_custom_call.1} parent=1 // pred_region
      _
    $region5: #{tpu_custom_call.1} parent=1 // pred_fallthru
      _
    // Predicated region
    $region6: #{tpu_custom_call.1} parent=1 // pred_check
      _
    $region7: #{tpu_custom_call.1} parent=1 // pred_check_branch
      %12 = sbr.rel (0) target = $region9
    $region8: #{tpu_custom_call.1} parent=1 // pred_region
      _
    $region9: #{tpu_custom_call.1} parent=1 // pred_fallthru
      _
    // Predicated region
    $region10: #{tpu_custom_call.1} parent=1 // pred_check
      _
    $region11: #{tpu_custom_call.1} parent=1 // pred_check_branch
      %14 = sbr.rel (0) target = $region13
    $region12: #{tpu_custom_call.1} parent=1 // pred_region
      _
    $region13: #{tpu_custom_call.1} parent=1 // pred_fallthru
      _
    %v15 = vld [vmem:[%s0] sm:$0xff]
    %v16 = vld [vmem:[%s0 + $0x8] sm:$0xff]
    %19 = vst [vmem:[#allocation1] ss:$2 sm:$0xff] %v15
    %v20 = vld.sshfl [vmem:[#allocation1] sm:$0xff pattern:$0x75316420]
    %v21 = vld.sshfl [vmem:[#allocation1 + $0x8] sm:$0xff pattern:$0x75316420]
    %s22 = scalar_lea.vmem [#allocation1], 16
    %23 = vst [vmem:[%s22] ss:$2 sm:$0xff] %v16
    %v24 = vld.sshfl [vmem:[#allocation1 + $0x10] sm:$0xff pattern:$0x75316420]
    %v25 = vld.sshfl [vmem:[#allocation1 + $0x18] sm:$0xff pattern:$0x75316420]
    %vm30 = vcmask 1043456
    %v31 = vsel %vm30, %v20, 0.0
    %v32 = vsel %vm30, %v21, 0.0
    %v33 = vadd.f32 %v31, %v32
    %34 = vadd.xlane.f32.xlu0 %v33
    %v35 = vpop.xlane.xlu0 %34
    %v36 = vsel %vm30, %v24, 0.0
    %v37 = vsel %vm30, %v25, 0.0
    %v38 = vadd.f32 %v36, %v37
    %39 = vadd.xlane.f32.xlu0 %v38
    %v40 = vpop.xlane.xlu0 %39
    %v41 = vsel %vm30, %v35, 0.0
    %v42 = vsel %vm30, %v40, 0.0
    %v43 = vadd.f32 %v41, %v42
    %v44 = vmul.f32 %v43, 0.001953125
    %v47 = vunpack.c.l.s4 839922192
    %v48 = vunpack.c.0.s8 %v47
    %v49 = vperm.slane %v44, %v48
    %v51 = vsub.f32 %v15, %v49
    %v52 = vsub.f32 %v16, %v49
    %v53 = vmul.f32 %v51, %v51
    %v54 = vmul.f32 %v52, %v52
    %57 = vst [vmem:[#allocation1] ss:$2 sm:$0xff] %v53
    %v58 = vld.sshfl [vmem:[#allocation1] sm:$0xff pattern:$0x75316420]
    %v59 = vld.sshfl [vmem:[#allocation1 + $0x8] sm:$0xff pattern:$0x75316420]
    %s60 = scalar_lea.vmem [#allocation1], 16
    %61 = vst [vmem:[%s60] ss:$2 sm:$0xff] %v54
    %v62 = vld.sshfl [vmem:[#allocation1 + $0x10] sm:$0xff pattern:$0x75316420]
    %v63 = vld.sshfl [vmem:[#allocation1 + $0x18] sm:$0xff pattern:$0x75316420]
    %v68 = vsel %vm30, %v58, 0.0
    %v69 = vsel %vm30, %v59, 0.0
    %v70 = vadd.f32 %v68, %v69
    %71 = vadd.xlane.f32.xlu0 %v70
    %v72 = vpop.xlane.xlu0 %71
    %v73 = vsel %vm30, %v62, 0.0
    %v74 = vsel %vm30, %v63, 0.0
    %v75 = vadd.f32 %v73, %v74
    %76 = vadd.xlane.f32.xlu0 %v75
    %v77 = vpop.xlane.xlu0 %76
    %v78 = vsel %vm30, %v72, 0.0
    %v79 = vsel %vm30, %v77, 0.0
    %v80 = vadd.f32 %v78, %v79
    %v81 = vmul.f32 %v80, 0.0019569471
    %v82 = vld [vmem:[%s1] sm:$0xf]
    %v83 = vld [vmem:[%s1 + $0x4] sm:$0xf]
    %v84 = vadd.f32 %v81, 1e-05
    %v85 = vrsqrt.pop %v84
    %v86 = vmul.f32 %v85, %v84
    %v87 = vmul.f32 %v86, %v85
    %v88 = vmul.f32 0.5, %v87
    %v89 = vsub.f32 1.5, %v88
    %v90 = vmul.f32 %v85, %v89
    %vm91 = vweird.f32 %v84
    %vm92 = vweird.f32 %v85
    %vm93 = vmor %vm91, %vm92
    %v94 = vsel %vm93, %v85, %v90
    %v95 = vmul.f32 %v82, %v94
    %v96 = vmul.f32 %v83, %v94
    %98 = vset.pattern.permute.xlu0 0
    %99 = vperm.xlu0 %98, %v95
    %v100 = vpop.permute.xlu0 %99
    %102 = vset.pattern.permute.xlu0 0
    %103 = vperm.xlu0 %102, %v96
    %v104 = vpop.permute.xlu0 %103
    %v106 = vunpack.c.l.s4 839922192
    %v107 = vunpack.c.0.s8 %v106
    %v108 = vperm.slane %v100, %v107
    %v110 = vunpack.c.l.s4 839922192
    %v111 = vunpack.c.0.s8 %v110
    %v112 = vperm.slane %v104, %v111
    %v115 = vmul.f32 %v51, %v108
    %v116 = vmul.f32 %v52, %v112
    %v117 = vld [vmem:[%s2] sm:$0xf]
    %v118 = vld [vmem:[%s2 + $0x4] sm:$0xf]
    %120 = vset.pattern.permute.xlu0 0
    %121 = vperm.xlu0 %120, %v117
    %v122 = vpop.permute.xlu0 %121
    %124 = vset.pattern.permute.xlu0 0
    %125 = vperm.xlu0 %124, %v118
    %v126 = vpop.permute.xlu0 %125
    %v128 = vunpack.c.l.s4 839922192
    %v129 = vunpack.c.0.s8 %v128
    %v130 = vperm.slane %v122, %v129
    %v132 = vunpack.c.l.s4 839922192
    %v133 = vunpack.c.0.s8 %v132
    %v134 = vperm.slane %v126, %v133
    %v137 = vadd.f32 %v115, %v130
    %v138 = vadd.f32 %v116, %v134
    %139 = vst [vmem:[#allocation2] sm:$0xff] %v137
    %140 = vst [vmem:[#allocation2 + $0x8] sm:$0xff] %v138
    // Predicated region
    $region14: #{tpu_custom_call.1} parent=1 // pred_check
      _
    $region15: #{tpu_custom_call.1} parent=1 // pred_check_branch
      %142 = sbr.rel (0) target = $region17
    $region16: #{tpu_custom_call.1} parent=1 // pred_region
      %144 = vsyncadd [#allocation3], 0
      %s145 = sshll.u32 [#allocation2], 4
      %s146 = int_to_ptr.vmem [resolvable:$true] %s145
      %s147 = sshll.u32 %s3, 4
      %s148 = int_to_ptr.hbm [resolvable:$true] %s147
      %153 = dma.vmem_to_hbm [thread:$0]  %s146, 256, %s148, [#allocation3], 128, 128, 8
    $region17: #{tpu_custom_call.1} parent=1 // pred_fallthru
      _
    // Predicated region
    $region18: #{tpu_custom_call.1} parent=1 // pred_check
      _
    $region19: #{tpu_custom_call.1} parent=1 // pred_check_branch
      %155 = sbr.rel (0) target = $region21
    $region20: #{tpu_custom_call.1} parent=1 // pred_region
      %157 = dma.done [#allocation3], 256
    $region21: #{tpu_custom_call.1} parent=1 // pred_fallthru
      _
    %158 = vsyncpa [#allocation3], 1

</llo_original>
